<compile_context>
chip_gen: v7x
topology: tpu7x:2x2x1
jax: 0.10.0
libtpu: 0.0.40
codegen_flags: <defaults>
</compile_context>

<pallas_src>
import functools

import jax
import jax.numpy as jnp
from jax.experimental import pallas as pl
from jax.experimental.pallas import tpu as pltpu

_NEG = -1e30  # finite "minus infinity": keeps exp()==0 without inf/nan arithmetic


def _round_up(x, m):
    return ((x + m - 1) // m) * m


def _label_smoothing_kernel(pred_ref, tgt_ref, out_ref,
                            m_ref, l_ref, s_ref, t_ref,
                            *, num_classes, tile_c, off_value, conf_minus_off):
    """Grid = (row_tiles, class_tiles); class axis is the inner reduction axis.

    pred_ref: (TN, TC) input-dtype VMEM tile
    tgt_ref : (TN, 1)  int32 VMEM tile
    out_ref : (TN, 1)  f32 per-row loss (written on the last class tile only)
    m/l/s/t : (TN, 1)  f32 scratch: running max, rescaled sum-exp,
              running sum_c(pred), running pred[target]
    """
    j = pl.program_id(1)

    @pl.when(j == 0)
    def _init():
        m_ref[...] = jnp.full(m_ref.shape, _NEG, jnp.float32)
        l_ref[...] = jnp.zeros(l_ref.shape, jnp.float32)
        s_ref[...] = jnp.zeros(s_ref.shape, jnp.float32)
        t_ref[...] = jnp.zeros(t_ref.shape, jnp.float32)

    x = pred_ref[...].astype(jnp.float32)           # f32 only in VMEM
    tgt = tgt_ref[...]                              # (TN, 1) int32

    # Global class index of every lane in this tile; mask padded/OOB classes.
    col = jax.lax.broadcasted_iota(jnp.int32, x.shape, 1) + j * tile_c
    valid = col < num_classes

    # --- online logsumexp -------------------------------------------------
    xm = jnp.where(valid, x, _NEG)
    m_prev = m_ref[...]
    m_new = jnp.maximum(m_prev, jnp.max(xm, axis=-1, keepdims=True))
    alpha = jnp.exp(m_prev - m_new)                 # rescale old sum-exp
    l_ref[...] = alpha * l_ref[...] + jnp.sum(jnp.exp(xm - m_new),
                                              axis=-1, keepdims=True)
    m_ref[...] = m_new

    # --- running sum_c(pred) and pred[n, target_n] -------------------------
    xz = jnp.where(valid, x, 0.0)
    s_ref[...] += jnp.sum(xz, axis=-1, keepdims=True)
    # NOTE: out-of-range targets simply never match (PyTorch scatter_ would error).
    t_ref[...] += jnp.sum(jnp.where(col == tgt, xz, 0.0), axis=-1, keepdims=True)

    @pl.when(j == pl.num_programs(1) - 1)
    def _finalize():
        lse = m_ref[...] + jnp.log(l_ref[...])
        # loss_n = lse_n - off*sum_c(pred) - (conf-off)*pred[target]
        out_ref[...] = lse - off_value * s_ref[...] - conf_minus_off * t_ref[...]


def label_smoothing_loss(pred, target, *, classes, smoothing=0.1,
                         block_n=None, block_c=None):
    """pred: (N, C) float (f32 or bf16), target: (N,) int. Returns scalar f32."""
    N, C = pred.shape
    assert C == classes, "pred's class dim must equal `classes`"

    confidence = 1.0 - smoothing
    off_value = smoothing / (classes - 1)
    conf_minus_off = confidence - off_value

    # ---- tile selection ----------------------------------------------------
    itemsize = jnp.dtype(pred.dtype).itemsize
    sublane = {4: 8, 2: 16, 1: 32}.get(itemsize, 8)   # native sublane packing
    if block_n is None:
        block_n = 256 if N >= 256 else _round_up(N, sublane)
    block_n = _round_up(block_n, sublane)

    if block_c is None:
        tile_budget = 4 * 1024 * 1024                 # bytes of pred per tile (x2 bufs)
        tc_cap = max(128, (tile_budget // (block_n * itemsize)) // 128 * 128)
        block_c = min(_round_up(C, 128), tc_cap)
    block_c = _round_up(block_c, 128)

    grid = (pl.cdiv(N, block_n), pl.cdiv(C, block_c))

    tgt = target.astype(jnp.int32).reshape(N, 1)

    kernel = functools.partial(
        _label_smoothing_kernel,
        num_classes=C, tile_c=block_c,
        off_value=float(off_value), conf_minus_off=float(conf_minus_off))

    per_row = pl.pallas_call(
        kernel,
        out_shape=jax.ShapeDtypeStruct((N, 1), jnp.float32),
        grid_spec=pltpu.PrefetchScalarGridSpec(
            num_scalar_prefetch=0,
            grid=grid,
            in_specs=[
                pl.BlockSpec((block_n, block_c), lambda i, j: (i, j)),  # pred tile
                pl.BlockSpec((block_n, 1), lambda i, j: (i, 0)),        # target rows
            ],
            out_specs=pl.BlockSpec((block_n, 1), lambda i, j: (i, 0)),  # per-row loss
            scratch_shapes=[pltpu.VMEM((block_n, 1), jnp.float32)] * 4,
        ),
        compiler_params=pltpu.CompilerParams(
            dimension_semantics=("parallel", "arbitrary"),
            vmem_limit_bytes=32 * 1024 * 1024,
        ),
    )(pred, tgt)

    # Mean over the batch (tiny XLA reduction on (N,1)).
    return jnp.mean(per_row)


def _reference(pred, target, *, classes, smoothing=0.1):
    """Plain-JAX reference mirroring the PyTorch module exactly."""
    confidence = 1.0 - smoothing
    logp = jax.nn.log_softmax(pred.astype(jnp.float32), axis=-1)
    true_dist = jnp.full_like(logp, smoothing / (classes - 1))
    onehot = jax.nn.one_hot(target, classes, dtype=jnp.bool_)
    true_dist = jnp.where(onehot, confidence, true_dist)
    return jnp.mean(jnp.sum(-true_dist * logp, axis=-1))


if __name__ == "__main__":
    key = jax.random.PRNGKey(0)
    k1, k2, k3, k4 = jax.random.split(key, 4)

    # Case 1: tiny f32 problem (single tile, class dim masked 32 -> 128 lanes).
    N1, C1 = 8, 32
    pred1 = jax.random.normal(k1, (N1, C1), dtype=jnp.float32)
    tgt1 = jax.random.randint(k2, (N1,), 0, C1, dtype=jnp.int32)
    loss1 = jax.block_until_ready(
        label_smoothing_loss(pred1, tgt1, classes=C1, smoothing=0.1))
    ref1 = _reference(pred1, tgt1, classes=C1, smoothing=0.1)
    assert jnp.allclose(loss1, ref1, atol=1e-4, rtol=1e-5), (loss1, ref1)

    # Case 2: bf16 input in HBM, forces a real grid (2 row tiles x 3 class
    # tiles), partial edge tiles in both dims, online-logsumexp accumulation.
    N2, C2 = 20, 300
    pred2 = jax.random.normal(k3, (N2, C2), dtype=jnp.float32).astype(jnp.bfloat16)
    tgt2 = jax.random.randint(k4, (N2,), 0, C2, dtype=jnp.int32)
    loss2 = jax.block_until_ready(
        label_smoothing_loss(pred2, tgt2, classes=C2, smoothing=0.1,
                             block_n=16, block_c=128))
    ref2 = _reference(pred2, tgt2, classes=C2, smoothing=0.1)
    assert jnp.allclose(loss2, ref2, atol=1e-3, rtol=1e-4), (loss2, ref2)

    print("KERNEL_OK")
</pallas_src>

<mosaic_0001>
module attributes {stable_mosaic.version = 11 : i64} {
  func.func @_label_smoothing_kernel(%arg0: i32, %arg1: i32, %arg2: memref<8x128xf32, #tpu.memory_space<vmem>>, %arg3: memref<8x1xi32, #tpu.memory_space<vmem>>, %arg4: memref<8x1xf32, #tpu.memory_space<vmem>>, %arg5: memref<8x1xf32, #tpu.memory_space<vmem>>, %arg6: memref<8x1xf32, #tpu.memory_space<vmem>>, %arg7: memref<8x1xf32, #tpu.memory_space<vmem>>, %arg8: memref<8x1xf32, #tpu.memory_space<vmem>>) attributes {dimension_semantics = [#tpu.dimension_semantics<parallel>, #tpu.dimension_semantics<arbitrary>], iteration_bounds = array<i64: 1, 1>, scalar_prefetch = 0 : i64, scratch_operands = 4 : i64, tpu.core_type = #tpu.core_type<tc>, window_params = [{transform_indices = @transform_0, window_bounds = array<i64: 8, 128>}, {transform_indices = @transform_1, window_bounds = array<i64: 8, 1>}, {transform_indices = @transform_2, window_bounds = array<i64: 8, 1>}]} {
    %c0_i32 = arith.constant 0 : i32
    %0 = arith.cmpi eq, %arg1, %c0_i32 : i32
    %1 = arith.extui %0 : i1 to i32
    %c0_i32_0 = arith.constant 0 : i32
    %2 = arith.cmpi ne, %1, %c0_i32_0 : i32
    scf.if %2 {
      %cst_28 = arith.constant -1.000000e+30 : f32
      %48 = vector.broadcast %cst_28 : f32 to vector<8x1xf32>
      %c0_29 = arith.constant 0 : index
      %c0_30 = arith.constant 0 : index
      %49 = vector.load %arg5[%c0_29, %c0_30] : memref<8x1xf32, #tpu.memory_space<vmem>>, vector<8x1xf32>
      tpu.vector_store %arg5[%c0_29, %c0_30], %48 {strides = array<i32>} : memref<8x1xf32, #tpu.memory_space<vmem>>, vector<8x1xf32>,
      %cst_31 = arith.constant 0.000000e+00 : f32
      %50 = vector.broadcast %cst_31 : f32 to vector<8x1xf32>
      %c0_32 = arith.constant 0 : index
      %c0_33 = arith.constant 0 : index
      %51 = vector.load %arg6[%c0_32, %c0_33] : memref<8x1xf32, #tpu.memory_space<vmem>>, vector<8x1xf32>
      tpu.vector_store %arg6[%c0_32, %c0_33], %50 {strides = array<i32>} : memref<8x1xf32, #tpu.memory_space<vmem>>, vector<8x1xf32>,
      %cst_34 = arith.constant 0.000000e+00 : f32
      %52 = vector.broadcast %cst_34 : f32 to vector<8x1xf32>
      %c0_35 = arith.constant 0 : index
      %c0_36 = arith.constant 0 : index
      %53 = vector.load %arg7[%c0_35, %c0_36] : memref<8x1xf32, #tpu.memory_space<vmem>>, vector<8x1xf32>
      tpu.vector_store %arg7[%c0_35, %c0_36], %52 {strides = array<i32>} : memref<8x1xf32, #tpu.memory_space<vmem>>, vector<8x1xf32>,
      %cst_37 = arith.constant 0.000000e+00 : f32
      %54 = vector.broadcast %cst_37 : f32 to vector<8x1xf32>
      %c0_38 = arith.constant 0 : index
      %c0_39 = arith.constant 0 : index
      %55 = vector.load %arg8[%c0_38, %c0_39] : memref<8x1xf32, #tpu.memory_space<vmem>>, vector<8x1xf32>
      tpu.vector_store %arg8[%c0_38, %c0_39], %54 {strides = array<i32>} : memref<8x1xf32, #tpu.memory_space<vmem>>, vector<8x1xf32>,
    } else {
    }
    %c0 = arith.constant 0 : index
    %c0_1 = arith.constant 0 : index
    %3 = vector.load %arg2[%c0, %c0_1] : memref<8x128xf32, #tpu.memory_space<vmem>>, vector<8x128xf32>
    %c0_2 = arith.constant 0 : index
    %c0_3 = arith.constant 0 : index
    %4 = vector.load %arg3[%c0_2, %c0_3] : memref<8x1xi32, #tpu.memory_space<vmem>>, vector<8x1xi32>
    %5 = tpu.iota {dimensions = array<i32: 1>} : vector<8x128xi32>
    %c128_i32 = arith.constant 128 : i32
    %6 = arith.muli %arg1, %c128_i32 : i32
    %7 = vector.broadcast %6 : i32 to vector<8x128xi32>
    %8 = arith.addi %5, %7 : vector<8x128xi32>
    %c32_i32 = arith.constant 32 : i32
    %9 = vector.broadcast %c32_i32 : i32 to vector<8x128xi32>
    %10 = arith.cmpi slt, %8, %9 : vector<8x128xi32>
    %cst = arith.constant -1.000000e+30 : f32
    %11 = vector.broadcast %cst : f32 to vector<8x128xf32>
    %12 = arith.select %10, %3, %11 : vector<8x128xi1>, vector<8x128xf32>
    %c0_4 = arith.constant 0 : index
    %c0_5 = arith.constant 0 : index
    %13 = vector.load %arg5[%c0_4, %c0_5] : memref<8x1xf32, #tpu.memory_space<vmem>>, vector<8x1xf32>
    %cst_6 = arith.constant dense<0xFF800000> : vector<8xf32>
    %14 = vector.multi_reduction <maximumf>, %12, %cst_6 [1] : vector<8x128xf32> to vector<8xf32>
    %15 = vector.shape_cast %14 : vector<8xf32> to vector<8x1xf32>
    %16 = arith.maximumf %13, %15 : vector<8x1xf32>
    %17 = arith.subf %13, %16 : vector<8x1xf32>
    %18 = math.exp %17 : vector<8x1xf32>
    %c0_7 = arith.constant 0 : index
    %c0_8 = arith.constant 0 : index
    %19 = vector.load %arg6[%c0_7, %c0_8] : memref<8x1xf32, #tpu.memory_space<vmem>>, vector<8x1xf32>
    %20 = arith.mulf %18, %19 : vector<8x1xf32>
    %21 = vector.broadcast %16 : vector<8x1xf32> to vector<8x128xf32>
    %22 = arith.subf %12, %21 : vector<8x128xf32>
    %23 = math.exp %22 : vector<8x128xf32>
    %cst_9 = arith.constant dense<0.000000e+00> : vector<8xf32>
    %24 = vector.multi_reduction <add>, %23, %cst_9 [1] : vector<8x128xf32> to vector<8xf32>
    %25 = vector.shape_cast %24 : vector<8xf32> to vector<8x1xf32>
    %26 = arith.addf %20, %25 : vector<8x1xf32>
    %c0_10 = arith.constant 0 : index
    %c0_11 = arith.constant 0 : index
    %27 = vector.load %arg6[%c0_10, %c0_11] : memref<8x1xf32, #tpu.memory_space<vmem>>, vector<8x1xf32>
    tpu.vector_store %arg6[%c0_10, %c0_11], %26 {strides = array<i32>} : memref<8x1xf32, #tpu.memory_space<vmem>>, vector<8x1xf32>,
    %c0_12 = arith.constant 0 : index
    %c0_13 = arith.constant 0 : index
    %28 = vector.load %arg5[%c0_12, %c0_13] : memref<8x1xf32, #tpu.memory_space<vmem>>, vector<8x1xf32>
    tpu.vector_store %arg5[%c0_12, %c0_13], %16 {strides = array<i32>} : memref<8x1xf32, #tpu.memory_space<vmem>>, vector<8x1xf32>,
    %cst_14 = arith.constant 0.000000e+00 : f32
    %29 = vector.broadcast %cst_14 : f32 to vector<8x128xf32>
    %30 = arith.select %10, %3, %29 : vector<8x128xi1>, vector<8x128xf32>
    %c0_15 = arith.constant 0 : index
    %c0_16 = arith.constant 0 : index
    %31 = vector.load %arg7[%c0_15, %c0_16] : memref<8x1xf32, #tpu.memory_space<vmem>>, vector<8x1xf32>
    %cst_17 = arith.constant dense<0.000000e+00> : vector<8xf32>
    %32 = vector.multi_reduction <add>, %30, %cst_17 [1] : vector<8x128xf32> to vector<8xf32>
    %33 = vector.shape_cast %32 : vector<8xf32> to vector<8x1xf32>
    %34 = arith.addf %31, %33 : vector<8x1xf32>
    %c0_18 = arith.constant 0 : index
    %c0_19 = arith.constant 0 : index
    %35 = vector.load %arg7[%c0_18, %c0_19] : memref<8x1xf32, #tpu.memory_space<vmem>>, vector<8x1xf32>
    tpu.vector_store %arg7[%c0_18, %c0_19], %34 {strides = array<i32>} : memref<8x1xf32, #tpu.memory_space<vmem>>, vector<8x1xf32>,
    %c0_20 = arith.constant 0 : index
    %c0_21 = arith.constant 0 : index
    %36 = vector.load %arg8[%c0_20, %c0_21] : memref<8x1xf32, #tpu.memory_space<vmem>>, vector<8x1xf32>
    %37 = vector.broadcast %4 : vector<8x1xi32> to vector<8x128xi32>
    %38 = arith.cmpi eq, %8, %37 : vector<8x128xi32>
    %cst_22 = arith.constant 0.000000e+00 : f32
    %39 = vector.broadcast %cst_22 : f32 to vector<8x128xf32>
    %40 = arith.select %38, %30, %39 : vector<8x128xi1>, vector<8x128xf32>
    %cst_23 = arith.constant dense<0.000000e+00> : vector<8xf32>
    %41 = vector.multi_reduction <add>, %40, %cst_23 [1] : vector<8x128xf32> to vector<8xf32>
    %42 = vector.shape_cast %41 : vector<8xf32> to vector<8x1xf32>
    %43 = arith.addf %36, %42 : vector<8x1xf32>
    %c0_24 = arith.constant 0 : index
    %c0_25 = arith.constant 0 : index
    %44 = vector.load %arg8[%c0_24, %c0_25] : memref<8x1xf32, #tpu.memory_space<vmem>>, vector<8x1xf32>
    tpu.vector_store %arg8[%c0_24, %c0_25], %43 {strides = array<i32>} : memref<8x1xf32, #tpu.memory_space<vmem>>, vector<8x1xf32>,
    %c0_i32_26 = arith.constant 0 : i32
    %45 = arith.cmpi eq, %arg1, %c0_i32_26 : i32
    %46 = arith.extui %45 : i1 to i32
    %c0_i32_27 = arith.constant 0 : i32
    %47 = arith.cmpi ne, %46, %c0_i32_27 : i32
    scf.if %47 {
      %c0_28 = arith.constant 0 : index
      %c0_29 = arith.constant 0 : index
      %48 = vector.load %arg5[%c0_28, %c0_29] : memref<8x1xf32, #tpu.memory_space<vmem>>, vector<8x1xf32>
      %c0_30 = arith.constant 0 : index
      %c0_31 = arith.constant 0 : index
      %49 = vector.load %arg6[%c0_30, %c0_31] : memref<8x1xf32, #tpu.memory_space<vmem>>, vector<8x1xf32>
      %50 = math.log %49 : vector<8x1xf32>
      %51 = arith.addf %48, %50 : vector<8x1xf32>
      %c0_32 = arith.constant 0 : index
      %c0_33 = arith.constant 0 : index
      %52 = vector.load %arg7[%c0_32, %c0_33] : memref<8x1xf32, #tpu.memory_space<vmem>>, vector<8x1xf32>
      %cst_34 = arith.constant 0.0032258064 : f32
      %53 = vector.broadcast %cst_34 : f32 to vector<8x1xf32>
      %54 = arith.mulf %53, %52 : vector<8x1xf32>
      %55 = arith.subf %51, %54 : vector<8x1xf32>
      %c0_35 = arith.constant 0 : index
      %c0_36 = arith.constant 0 : index
      %56 = vector.load %arg8[%c0_35, %c0_36] : memref<8x1xf32, #tpu.memory_space<vmem>>, vector<8x1xf32>
      %cst_37 = arith.constant 0.896774172 : f32
      %57 = vector.broadcast %cst_37 : f32 to vector<8x1xf32>
      %58 = arith.mulf %57, %56 : vector<8x1xf32>
      %59 = arith.subf %55, %58 : vector<8x1xf32>
      %c0_38 = arith.constant 0 : index
      %c0_39 = arith.constant 0 : index
      %60 = vector.load %arg4[%c0_38, %c0_39] : memref<8x1xf32, #tpu.memory_space<vmem>>, vector<8x1xf32>
      tpu.vector_store %arg4[%c0_38, %c0_39], %59 {strides = array<i32>} : memref<8x1xf32, #tpu.memory_space<vmem>>, vector<8x1xf32>,
    } else {
    }
    return
  }
  func.func @transform_0(%arg0: i32, %arg1: i32) -> (i32, i32) {
    %c0_i32 = arith.constant 0 : i32
    return %arg0, %arg1 : i32, i32
  }
  func.func @transform_1(%arg0: i32, %arg1: i32) -> (i32, i32) {
    %c0_i32 = arith.constant 0 : i32
    %c0_i32_0 = arith.constant 0 : i32
    return %arg0, %c0_i32 : i32, i32
  }
  func.func @transform_2(%arg0: i32, %arg1: i32) -> (i32, i32) {
    %c0_i32 = arith.constant 0 : i32
    %c0_i32_0 = arith.constant 0 : i32
    return %arg0, %c0_i32 : i32, i32
  }
}

</mosaic_0001>

<llo_original>
// kernel: tpu_custom_call.1
$region0: #{tpu_custom_call.1}
  #allocation0 [shape = 'u32[]', space=smem, size = 0x4, offset = 0x4, fixed_abs, tag = 'smem constant byte address 0x4 - core index']
  #allocation1 [shape = 'u32[144,128]{1,0:T(1,128)}', space=vmem, size = 0x12000, scoped, tag = 'internal scratch']
  #allocation2 [shape = 'f32[8,1]{1,0:T(8,128)}', space=vmem, size = 0x1000, scoped, tag = 'scratch operand']
  #allocation3 [shape = 'f32[8,1]{1,0:T(8,128)}', space=vmem, size = 0x1000, scoped, tag = 'scratch operand']
  #allocation4 [shape = 'f32[8,1]{1,0:T(8,128)}', space=vmem, size = 0x1000, scoped, tag = 'scratch operand']
  #allocation5 [shape = 'f32[8,1]{1,0:T(8,128)}', space=vmem, size = 0x1000, scoped, tag = 'scratch operand']
  %s0 = inlined_call_operand.vmem [shape: f32[8,32], index: 0, kind: input, shape index: {}]
  %s1 = inlined_call_operand.vmem [shape: s32[8,1], index: 1, kind: input, shape index: {}]
  %s2 = inlined_call_operand.vmem [shape: f32[8,1], index: 2, kind: output, shape index: {}]
  %s3 = sld [smem:[#allocation0]]
  $region26: #{tpu_custom_call.1} parent=0
    _
  %s5 = ssub.s32 1, %s3
  %s6 = scalar_select 0, %s5, %s3
  // Predicated region
  $region2: #{tpu_custom_call.1} parent=0 // pred_check
    _
  $region3: #{tpu_custom_call.1} parent=0 // pred_check_branch
    %8 = sbr.rel (0) target = $region5
  $region4: #{tpu_custom_call.1} parent=0 // pred_region
    _
  $region5: #{tpu_custom_call.1} parent=0 // pred_fallthru
    _
  // Predicated region
  $region6: #{tpu_custom_call.1} parent=0 // pred_check
    _
  $region7: #{tpu_custom_call.1} parent=0 // pred_check_branch
    %10 = sbr.rel (0) target = $region9
  $region8: #{tpu_custom_call.1} parent=0 // pred_region
    _
  $region9: #{tpu_custom_call.1} parent=0 // pred_fallthru
    _
  %p11 = scmp.eq.s32.totalorder 0, 0
  // Predicated region
  $region10: #{tpu_custom_call.1} parent=0 // pred_check
    %p12 = pneg %p11
  $region11: #{tpu_custom_call.1} parent=0 // pred_check_branch
    %14 = sbr.rel (%p12) target = $region13
  $region12: #{tpu_custom_call.1} parent=0 // pred_region
    %vm15 = vcmask 7168
    %16 = vst.msk [vmem:[#allocation2] sm:$0xff] %vm15, -1e+30
    %17 = vst.msk [vmem:[#allocation3] sm:$0xff] %vm15, 0.0
    %18 = vst.msk [vmem:[#allocation4] sm:$0xff] %vm15, 0.0
    %19 = vst.msk [vmem:[#allocation5] sm:$0xff] %vm15, 0.0
  $region13: #{tpu_custom_call.1} parent=0 // pred_fallthru
    _
  %v20 = vld [vmem:[%s0] sm:$0xff]
  %v21 = vld [vmem:[%s1] sm:$0xff]
  %v22 = vlaneseq
  %v23 = vand.u32 %v22, 127
  %s24 = smul.u32 0, 128
  %v25 = vstv %s24
  %v26 = vadd.s32 %v23, %v25
  %vm27 = vcmp.lt.s32.totalorder %v26, 32
  %v28 = vsel %vm27, %v20, -1e+30
  %v29 = vld [vmem:[#allocation2] sm:$0xff]
  %30 = vmax.xlane.f32.xlu0 %v28
  %v31 = vpop.xlane.xlu0 %30
  %v32 = vmax.f32 %v29, %v31
  %v33 = vsub.f32 %v29, %v32
  %v34 = vmul.f32 %v33, 1.442695
  %v35 = vpow.pop %v34
  %v36 = vld [vmem:[#allocation3] sm:$0xff]
  %v37 = vmul.f32 %v35, %v36
  %39 = vset.pattern.permute.xlu0 0
  %40 = vperm.xlu0 %39, %v32
  %v41 = vpop.permute.xlu0 %40
  %v43 = vsub.f32 %v28, %v41
  %v44 = vmul.f32 %v43, 1.442695
  %v45 = vpow.pop %v44
  %46 = vadd.xlane.f32.xlu0 %v45
  %v47 = vpop.xlane.xlu0 %46
  %v48 = vadd.f32 %v37, %v47
  %vm49 = vcmask 7168
  %50 = vst.msk [vmem:[#allocation3] sm:$0xff] %vm49, %v48
  %51 = vst.msk [vmem:[#allocation2] sm:$0xff] %vm49, %v32
  %v52 = vsel %vm27, %v20, 0.0
  %v53 = vld [vmem:[#allocation4] sm:$0xff]
  %54 = vadd.xlane.f32.xlu0 %v52
  %v55 = vpop.xlane.xlu0 %54
  %v56 = vadd.f32 %v53, %v55
  %57 = vst.msk [vmem:[#allocation4] sm:$0xff] %vm49, %v56
  %v58 = vld [vmem:[#allocation5] sm:$0xff]
  %59 = vset.pattern.permute.xlu0 0
  %60 = vperm.xlu0 %59, %v21
  %v61 = vpop.permute.xlu0 %60
  %vm62 = vcmp.eq.s32.totalorder %v26, %v61
  %v63 = vsel %vm62, %v52, 0.0
  %64 = vadd.xlane.f32.xlu0 %v63
  %v65 = vpop.xlane.xlu0 %64
  %v66 = vadd.f32 %v58, %v65
  %67 = vst.msk [vmem:[#allocation5] sm:$0xff] %vm49, %v66
  // Predicated region
  $region14: #{tpu_custom_call.1} parent=0 // pred_check
    %p68 = pneg %p11
  $region15: #{tpu_custom_call.1} parent=0 // pred_check_branch
    %70 = sbr.rel (%p68) target = $region17
  $region16: #{tpu_custom_call.1} parent=0 // pred_region
    %v71 = vld [vmem:[#allocation2] sm:$0xff]
    %v72 = vld [vmem:[#allocation3] sm:$0xff]
    %v73 = vlog2.pop %v72
    %v74 = vmul.f32 %v73, 0.6931472
    %v75 = vadd.f32 %v71, %v74
    %v76 = vld [vmem:[#allocation4] sm:$0xff]
    %v77 = vmul.f32 %v76, 0.0032258064
    %v78 = vsub.f32 %v75, %v77
    %v79 = vld [vmem:[#allocation5] sm:$0xff]
    %v80 = vmul.f32 %v79, 0.8967742
    %v81 = vsub.f32 %v78, %v80
    %82 = vst.msk [vmem:[%s2] sm:$0xff] %vm49, %v81
  $region17: #{tpu_custom_call.1} parent=0 // pred_fallthru
    _
  // Predicated region
  $region18: #{tpu_custom_call.1} parent=0 // pred_check
    _
  $region19: #{tpu_custom_call.1} parent=0 // pred_check_branch
    %84 = sbr.rel (0) target = $region21
  $region20: #{tpu_custom_call.1} parent=0 // pred_region
    _
  $region21: #{tpu_custom_call.1} parent=0 // pred_fallthru
    _
  // Predicated region
  $region22: #{tpu_custom_call.1} parent=0 // pred_check
    _
  $region23: #{tpu_custom_call.1} parent=0 // pred_check_branch
    %86 = sbr.rel (0) target = $region25
  $region24: #{tpu_custom_call.1} parent=0 // pred_region
    _
  $region25: #{tpu_custom_call.1} parent=0 // pred_fallthru
    _

</llo_original>
